<compile_context>
chip_gen: v7x
topology: tpu7x:2x2x1
jax: 0.10.0
libtpu: 0.0.40
codegen_flags: <defaults>
</compile_context>

<pallas_src>
import jax
import jax.numpy as jnp
import numpy as np
from jax.experimental import pallas as pl
from jax.experimental.pallas import tpu as pltpu

_EPS = 1e-5
_DILATIONS = (1, 2, 4, 8)


def _rup(n, m):
    return ((n + m - 1) // m) * m


# ----------------------------------------------------------------------------
# One-time probe of pltpu.roll's rotate convention (expected to match jnp.roll:
# out[p] = x[(p - shift) % L]).  A tiny kernel checks it so a convention change
# can never silently flip the convolution taps.
_ROLL_SIGN = None


def _roll_sign():
    global _ROLL_SIGN
    if _ROLL_SIGN is None:
        def probe(x_ref, o_ref):
            o_ref[...] = pltpu.roll(x_ref[...], 1, axis=1)

        x = jax.lax.broadcasted_iota(jnp.int32, (8, 128), 1)
        y = pl.pallas_call(
            probe, out_shape=jax.ShapeDtypeStruct((8, 128), jnp.int32))(x)
        _ROLL_SIGN = 1 if int(y[0, 0]) == 127 else -1
    return _ROLL_SIGN


# ----------------------------------------------------------------------------
# Host-side constant construction.
def build_tap_masks(H, W, dilations, reps):
    """masks[d, t, 0, p] = 1 iff output pixel p (row-major) reads an in-bounds
    source for tap t = a*3+b at dilation d.  Tiled `reps` times along the lane
    axis (one copy per sample packed into the lane dimension), which also makes
    cross-sample reads from the flat roll land on masked-out positions."""
    HW = H * W
    p = np.arange(HW)
    r, c = p // W, p % W
    m = np.zeros((len(dilations), 9, 1, HW), np.float32)
    for di, d in enumerate(dilations):
        for a in range(3):
            for b in range(3):
                sr, sc = r + (a - 1) * d, c + (b - 1) * d
                m[di, a * 3 + b, 0, :] = ((sr >= 0) & (sr < H) &
                                          (sc >= 0) & (sc < W))
    return jnp.asarray(np.tile(m, (1, 1, 1, reps)))


def _fold_rebnconv(p):
    """Fold conv bias + inference-mode BatchNorm into the conv weights."""
    scale = p["gamma"] / jnp.sqrt(p["var"] + _EPS)
    w = p["w"] * scale[:, None, None, None]                 # (Co, Ci, 3, 3)
    b = (p["b"] - p["mean"]) * scale + p["beta"]            # (Co,)
    return w, b


def _pad_axis(a, axis, size):
    pad = size - a.shape[axis]
    if pad == 0:
        return a
    widths = [(0, 0)] * a.ndim
    widths[axis] = (0, pad)
    return jnp.pad(a, widths)


def _im2col_weight(w, cin_p, cout_p):
    """(Co, Ci, 3, 3) -> lane-dense (Co_p, 9*Ci_p); column order t*Ci_p + ci,
    tap t = a*3 + b, matching the in-kernel im2col stacking order."""
    co, ci = w.shape[0], w.shape[1]
    w = jnp.transpose(w, (0, 2, 3, 1)).reshape(co, 9, ci)   # (Co, 9, Ci)
    w = _pad_axis(_pad_axis(w, 0, cout_p), 2, cin_p)        # (Co_p, 9, Ci_p)
    return w.reshape(cout_p, 9 * cin_p)


def _prep(w, b, cin_p, cout_p, dtype):
    ww = _im2col_weight(w, cin_p, cout_p).astype(dtype)
    bb = _pad_axis(b, 0, cout_p).reshape(cout_p, 1).astype(jnp.float32)
    return ww, bb


def _prep_dec(w, b, half_in_p, cout_p, dtype):
    """Decoder conv (in = 2*mid from torch.cat): split the weight into the two
    concat operands and lay both out im2col-style -> (Co_p, 18*half_in_p)."""
    m = w.shape[1] // 2
    wa = _im2col_weight(w[:, :m], half_in_p, cout_p)
    wb = _im2col_weight(w[:, m:], half_in_p, cout_p)
    ww = jnp.concatenate([wa, wb], axis=1).astype(dtype)
    bb = _pad_axis(b, 0, cout_p).reshape(cout_p, 1).astype(jnp.float32)
    return ww, bb


def _const_spec(a):
    nd = a.ndim
    return pl.BlockSpec(a.shape, lambda g, nd=nd: (0,) * nd)


# ----------------------------------------------------------------------------
def rsu4f_forward(x, params, *, samples_per_step=None,
                  compute_dtype=jnp.float32):
    """x: (N, in_ch, H, W) f32.  params: 8 REBNCONV param dicts in order
    [rebnconvin, 1, 2, 3, 4, 3d, 2d, 1d] (inference-mode BN statistics)."""
    N, in_ch, H, W = x.shape
    HW = H * W
    out_ch = params[0]["w"].shape[0]
    mid_ch = params[1]["w"].shape[0]

    bf16 = np.dtype(compute_dtype) == np.dtype(jnp.bfloat16)
    pad_unit = 16 if bf16 else 8
    in_p, out_p, mid_p = (_rup(c, pad_unit) for c in (in_ch, out_ch, mid_ch))

    # Fold samples into the lane axis to amortize grid-step overhead, but keep
    # >= 2 grid steps when N >= 2 so both v7x TensorCores get a "parallel" step.
    if samples_per_step is None:
        min_steps = 2 if N >= 2 else 1
        samples_per_step = 1
        for cand in range(N, 0, -1):
            if N % cand == 0 and N // cand >= min_steps and cand * HW <= 2048:
                samples_per_step = cand
                break
    assert N % samples_per_step == 0
    nb = samples_per_step
    G = N // nb
    L = nb * HW                                  # lane extent per grid step

    folded = [_fold_rebnconv(p) for p in params]
    win, bin_ = _prep(*folded[0], in_p, out_p, compute_dtype)
    w1, b1 = _prep(*folded[1], out_p, mid_p, compute_dtype)
    w2, b2 = _prep(*folded[2], mid_p, mid_p, compute_dtype)
    w3, b3 = _prep(*folded[3], mid_p, mid_p, compute_dtype)
    w4, b4 = _prep(*folded[4], mid_p, mid_p, compute_dtype)
    w3d, b3d = _prep_dec(*folded[5], mid_p, mid_p, compute_dtype)
    w2d, b2d = _prep_dec(*folded[6], mid_p, mid_p, compute_dtype)
    w1d, b1d = _prep_dec(*folded[7], mid_p, out_p, compute_dtype)

    masks = build_tap_masks(H, W, _DILATIONS, nb)            # (4, 9, 1, L) f32

    x2 = _pad_axis(x.astype(jnp.float32), 1, in_p).reshape(N, in_p, HW)
    x2 = x2.reshape(G, nb, in_p, HW).transpose(0, 2, 1, 3).reshape(G, in_p, L)

    sign = _roll_sign()                          # host-side, before tracing

    def kernel(x_ref, mask_ref,
               win_ref, bin_ref, w1_ref, b1_ref, w2_ref, b2_ref,
               w3_ref, b3_ref, w4_ref, b4_ref,
               w3d_ref, b3d_ref, w2d_ref, b2d_ref, w1d_ref, b1d_ref,
               o_ref):

        def im2col(h, dil):
            """(C, L) -> (9*C, L): 9 rolled + masked copies stacked on the
            sublane axis.  Rolls go to the XLU, mask multiplies to the VPU."""
            d_idx = _DILATIONS.index(dil)
            cols = []
            for a in range(3):
                for b in range(3):
                    off = ((a - 1) * W + (b - 1)) * dil      # flat src offset
                    if off == 0:
                        cols.append(h)                       # center: all valid
                    else:
                        s = (sign * -off) % L
                        cols.append(pltpu.roll(h, s, axis=1)
                                    * mask_ref[d_idx, a * 3 + b])
            return jnp.concatenate(cols, axis=0)

        def rebnconv(hs, dil, w_ref, b_ref):
            """Conv2d(3x3, dilation) + folded BN + ReLU as ONE im2col matmul."""
            stacked = jnp.concatenate([im2col(h, dil) for h in hs], axis=0)
            y = jnp.dot(w_ref[...], stacked.astype(w_ref.dtype),
                        preferred_element_type=jnp.float32)
            return jnp.maximum(y + b_ref[...], 0.0)

        hx = x_ref[0]                                         # (in_p, L) f32
        hxin = rebnconv([hx], 1, win_ref, bin_ref)
        hx1 = rebnconv([hxin], 1, w1_ref, b1_ref)
        hx2 = rebnconv([hx1], 2, w2_ref, b2_ref)
        hx3 = rebnconv([hx2], 4, w3_ref, b3_ref)
        hx4 = rebnconv([hx3], 8, w4_ref, b4_ref)
        hx3d = rebnconv([hx4, hx3], 4, w3d_ref, b3d_ref)      # cat(hx4, hx3)
        hx2d = rebnconv([hx3d, hx2], 2, w2d_ref, b2d_ref)     # cat(hx3d, hx2)
        hx1d = rebnconv([hx2d, hx1], 1, w1d_ref, b1d_ref)     # cat(hx2d, hx1)
        o_ref[0] = (hx1d + hxin).astype(o_ref.dtype)

    operands = [x2, masks, win, bin_, w1, b1, w2, b2, w3, b3, w4, b4,
                w3d, b3d, w2d, b2d, w1d, b1d]
    in_specs = ([pl.BlockSpec((1, in_p, L), lambda g: (g, 0, 0))]
                + [_const_spec(a) for a in operands[1:]])

    out = pl.pallas_call(
        kernel,
        out_shape=jax.ShapeDtypeStruct((G, out_p, L), jnp.float32),
        grid=(G,),
        in_specs=in_specs,
        out_specs=pl.BlockSpec((1, out_p, L), lambda g: (g, 0, 0)),
        compiler_params=pltpu.CompilerParams(
            dimension_semantics=("parallel",),
            vmem_limit_bytes=16 * 1024 * 1024),
    )(*operands)

    out = out.reshape(G, out_p, nb, HW).transpose(0, 2, 1, 3)
    return out.reshape(N, out_p, H, W)[:, :out_ch]


# ----------------------------- pure-JAX reference ---------------------------
def rsu4f_reference(x, params):
    def rebn(h, p, d):
        y = jax.lax.conv_general_dilated(
            h, p["w"], window_strides=(1, 1), padding=((d, d), (d, d)),
            rhs_dilation=(d, d), dimension_numbers=("NCHW", "OIHW", "NCHW"))
        y = y + p["b"].reshape(1, -1, 1, 1)
        inv = (p["gamma"] / jnp.sqrt(p["var"] + _EPS)).reshape(1, -1, 1, 1)
        y = (y - p["mean"].reshape(1, -1, 1, 1)) * inv + p["beta"].reshape(1, -1, 1, 1)
        return jnp.maximum(y, 0.0)

    hxin = rebn(x, params[0], 1)
    hx1 = rebn(hxin, params[1], 1)
    hx2 = rebn(hx1, params[2], 2)
    hx3 = rebn(hx2, params[3], 4)
    hx4 = rebn(hx3, params[4], 8)
    hx3d = rebn(jnp.concatenate([hx4, hx3], axis=1), params[5], 4)
    hx2d = rebn(jnp.concatenate([hx3d, hx2], axis=1), params[6], 2)
    hx1d = rebn(jnp.concatenate([hx2d, hx1], axis=1), params[7], 1)
    return hx1d + hxin


# ---------------------------------- main -------------------------------------
def _make_rebnconv_params(key, in_ch, out_ch):
    k = jax.random.split(key, 6)
    std = (2.0 / (in_ch * 9)) ** 0.5
    return dict(
        w=std * jax.random.normal(k[0], (out_ch, in_ch, 3, 3), jnp.float32),
        b=0.1 * jax.random.normal(k[1], (out_ch,), jnp.float32),
        gamma=1.0 + 0.1 * jax.random.normal(k[2], (out_ch,), jnp.float32),
        beta=0.1 * jax.random.normal(k[3], (out_ch,), jnp.float32),
        mean=0.1 * jax.random.normal(k[4], (out_ch,), jnp.float32),
        var=0.5 + jax.random.uniform(k[5], (out_ch,), jnp.float32),
    )


if __name__ == "__main__":
    N, in_ch, mid_ch, out_ch, H, W = 2, 3, 12, 3, 16, 16

    key = jax.random.PRNGKey(0)
    keys = jax.random.split(key, 9)
    x = jax.random.normal(keys[0], (N, in_ch, H, W), dtype=jnp.float32)

    layer_defs = [(in_ch, out_ch), (out_ch, mid_ch), (mid_ch, mid_ch),
                  (mid_ch, mid_ch), (mid_ch, mid_ch), (2 * mid_ch, mid_ch),
                  (2 * mid_ch, mid_ch), (2 * mid_ch, out_ch)]
    params = [_make_rebnconv_params(k, ci, co)
              for k, (ci, co) in zip(keys[1:], layer_defs)]

    out = jax.block_until_ready(rsu4f_forward(x, params))

    ref = rsu4f_reference(x, params)
    np.testing.assert_allclose(np.asarray(out), np.asarray(ref),
                               rtol=2e-3, atol=2e-3)
    print("KERNEL_OK")
</pallas_src>

<mosaic_0001>
module attributes {stable_mosaic.version = 11 : i64} {
  func.func @probe(%arg0: memref<8x128xi32, #tpu.memory_space<vmem>>, %arg1: memref<8x128xi32, #tpu.memory_space<vmem>>) attributes {dimension_semantics = [], scalar_prefetch = 0 : i64, scratch_operands = 0 : i64, tpu.core_type = #tpu.core_type<tc>} {
    %c0 = arith.constant 0 : index
    %c0_0 = arith.constant 0 : index
    %0 = vector.load %arg0[%c0, %c0_0] : memref<8x128xi32, #tpu.memory_space<vmem>>, vector<8x128xi32>
    %c1_i32 = arith.constant 1 : i32
    %1 = tpu.dynamic_rotate %0 by %c1_i32 dim 1 : vector<8x128xi32>, i32 -> vector<8x128xi32>
    %c0_1 = arith.constant 0 : index
    %c0_2 = arith.constant 0 : index
    %2 = vector.load %arg1[%c0_1, %c0_2] : memref<8x128xi32, #tpu.memory_space<vmem>>, vector<8x128xi32>
    tpu.vector_store %arg1[%c0_1, %c0_2], %1 {strides = array<i32>} : memref<8x128xi32, #tpu.memory_space<vmem>>, vector<8x128xi32>,
    return
  }
}

</mosaic_0001>

<llo_original>
// kernel: tpu_custom_call.1
$region0: #{tpu_custom_call.1}
  #allocation0 [shape = 'u32[]', space=smem, size = 0x4, offset = 0x4, fixed_abs, tag = 'smem constant byte address 0x4 - core index']
  #allocation1 [shape = 'u32[144,128]{1,0:T(1,128)}', space=vmem, size = 0x12000, scoped, tag = 'internal scratch']
  %s0 = inlined_call_operand.hbm [shape: s32[8,128], index: 0, kind: input, shape index: {}]
  %s1 = inlined_call_operand.hbm [shape: s32[8,128], index: 1, kind: output, shape index: {}]
  %s2 = sld [smem:[#allocation0]]
  $region18: #{tpu_custom_call.1} parent=0
    _
  %s4 = ssub.s32 1, %s2
  %s5 = scalar_select 0, %s4, %s2
  $region1: #{tpu_custom_call.1} parent=0
    #allocation2 [shape = 'u8[4096]{0}', space=vmem, size = 0x1000, scoped, tag = 'input window, operand 0, single buffered']
    #allocation3 [shape = 's32[1]{0}', space=sflag, size = 0x4, scoped, tag = 'scoped memory for tpu_custom_call.1']
    #allocation4 [shape = 's32[1]{0}', space=sflag, size = 0x4, scoped, tag = 'scoped memory for tpu_custom_call.1']
    #allocation5 [shape = 'u8[4096]{0}', space=vmem, size = 0x1000, scoped, tag = 'output window, operand 0, single buffered']
    %6 = vsyncpa [#allocation3], 0
    %7 = vsyncpa [#allocation4], 0
    // Predicated region
    $region2: #{tpu_custom_call.1} parent=1 // pred_check
      _
    $region3: #{tpu_custom_call.1} parent=1 // pred_check_branch
      %9 = sbr.rel (0) target = $region5
    $region4: #{tpu_custom_call.1} parent=1 // pred_region
      %s11 = ssub.s32 128, 128
      %12 = vsyncadd [#allocation3], %s11
      %s14 = sshll.u32 [#allocation2], 4
      %s15 = int_to_ptr.vmem [resolvable:$true] %s14
      %17 = dma.hbm_to_vmem [thread:$0]  %s0, 128, %s15, [#allocation3]
    $region5: #{tpu_custom_call.1} parent=1 // pred_fallthru
      _
    // Predicated region
    $region6: #{tpu_custom_call.1} parent=1 // pred_check
      _
    $region7: #{tpu_custom_call.1} parent=1 // pred_check_branch
      %19 = sbr.rel (0) target = $region9
    $region8: #{tpu_custom_call.1} parent=1 // pred_region
      %20 = dma.done [#allocation3], 128
    $region9: #{tpu_custom_call.1} parent=1 // pred_fallthru
      _
    %v21 = vld [vmem:[#allocation2] sm:$0xff]
    %22 = vrot.lane.b32.xlu0 %v21, 1
    %v23 = vpop.permute.xlu0 %22
    %24 = vst [vmem:[#allocation5] sm:$0xff] %v23
    // Predicated region
    $region10: #{tpu_custom_call.1} parent=1 // pred_check
      _
    $region11: #{tpu_custom_call.1} parent=1 // pred_check_branch
      %26 = sbr.rel (0) target = $region13
    $region12: #{tpu_custom_call.1} parent=1 // pred_region
      %s28 = ssub.s32 128, 128
      %29 = vsyncadd [#allocation4], %s28
      %s31 = sshll.u32 [#allocation5], 4
      %s32 = int_to_ptr.vmem [resolvable:$true] %s31
      %34 = dma.vmem_to_hbm [thread:$0]  %s32, 128, %s1, [#allocation4]
    $region13: #{tpu_custom_call.1} parent=1 // pred_fallthru
      _
    // Predicated region
    $region14: #{tpu_custom_call.1} parent=1 // pred_check
      _
    $region15: #{tpu_custom_call.1} parent=1 // pred_check_branch
      %36 = sbr.rel (0) target = $region17
    $region16: #{tpu_custom_call.1} parent=1 // pred_region
      %37 = dma.done [#allocation4], 128
    $region17: #{tpu_custom_call.1} parent=1 // pred_fallthru
      _
    %38 = vsyncpa [#allocation3], 1
    %39 = vsyncpa [#allocation4], 1

</llo_original>
